<compile_context>
chip_gen: v5e
topology: v5e:2x2
jax: 0.10.0
libtpu: 0.0.40
codegen_flags: <defaults>
</compile_context>

<pallas_src>
import math

import jax
import jax.numpy as jnp
from jax import lax
from jax.experimental import pallas as pl
from jax.experimental.pallas import tpu as pltpu

SEQ = 8                    # L
BATCH = 2                  # N
EMBED = 32                 # E (input_dim)
HEADS = 4                  # num_heads
HEAD_DIM = EMBED // HEADS  # 8
FF = 4 * EMBED             # 128
ROWS = BATCH * SEQ         # 16
EPS = 1e-5
LANE = 128
assert FF <= LANE and 3 * EMBED <= LANE  # packing below assumes one lane-tile per segment

# --- packed-buffer lane offsets (every segment starts on a 128-lane tile boundary) ---
# w_pack : (EMBED, 3*LANE)  = [ W1 | Wqkv | Wo ]
W1_OFF, WQKV_OFF, WO_OFF = 0, LANE, 2 * LANE
# vec_pack : (1, 8*LANE)    = [ bf1 | bqkv | bo | g1 | be1 | g2 | be2 | bf2 ]
BF1_OFF, BQKV_OFF, BO_OFF, G1_OFF, BE1_OFF, G2_OFF, BE2_OFF, BF2_OFF = [i * LANE for i in range(8)]


def _layernorm(x, gamma, beta):
    mean = jnp.mean(x, axis=-1, keepdims=True)
    var = jnp.mean((x - mean) ** 2, axis=-1, keepdims=True)   # biased variance, matches PyTorch
    return (x - mean) * lax.rsqrt(var + EPS) * gamma + beta


def _gelu_exact(x):
    # PyTorch nn.GELU() default = exact erf-based GELU
    return 0.5 * x * (1.0 + lax.erf(x / math.sqrt(2.0)))


def transformer_block_kernel(x_ref, wpack_ref, w2_ref, vpack_ref, o_ref):
    x = x_ref[...]                                                     # (16, 32), row order b*SEQ+l

    # ---- fused Q/K/V projection (Wq, bq pre-scaled by 1/sqrt(D) in the wrapper) ----
    wqkv = wpack_ref[:, WQKV_OFF:WQKV_OFF + 3 * EMBED]                 # (32, 96)
    bqkv = vpack_ref[:, BQKV_OFF:BQKV_OFF + 3 * EMBED]                 # (1, 96)
    qkv = jnp.dot(x, wqkv, preferred_element_type=jnp.float32) + bqkv  # (16, 96)

    # Block-diagonal "same batch" mask over the full (16, 16) score matrix.
    # row_b[r, c] = r // SEQ, col_b[r, c] = c // SEQ, built from iota+reshape (no vector int div).
    row_b = lax.broadcasted_iota(jnp.int32, (BATCH, SEQ, ROWS), 0).reshape(ROWS, ROWS)
    col_b = lax.broadcasted_iota(jnp.int32, (ROWS, BATCH, SEQ), 1).reshape(ROWS, ROWS)
    same_batch = row_b == col_b
    neg_big = jnp.float32(-1e30)

    # ---- attention: per-head masked scores over all rows; no head-stack relayout needed ----
    head_outs = []
    for h in range(HEADS):
        q_h = qkv[:, h * HEAD_DIM:(h + 1) * HEAD_DIM]                              # (16, 8)
        k_h = qkv[:, EMBED + h * HEAD_DIM:EMBED + (h + 1) * HEAD_DIM]              # (16, 8)
        v_h = qkv[:, 2 * EMBED + h * HEAD_DIM:2 * EMBED + (h + 1) * HEAD_DIM]      # (16, 8)
        s = lax.dot_general(q_h, k_h, (((1,), (1,)), ((), ())),
                            preferred_element_type=jnp.float32)                    # (16, 16)
        s = jnp.where(same_batch, s, neg_big)
        s = s - jnp.max(s, axis=-1, keepdims=True)
        p = jnp.exp(s)                                                             # masked -> exactly 0
        p = p * (1.0 / jnp.sum(p, axis=-1, keepdims=True))                         # exact recip (tolerance)
        head_outs.append(jnp.dot(p, v_h, preferred_element_type=jnp.float32))      # (16, 8)
    attn = jnp.concatenate(head_outs, axis=-1)                                     # (16, 32)

    # ---- output projection: single K=32 matmul ----
    wo = wpack_ref[:, WO_OFF:WO_OFF + EMBED]                                       # (32, 32)
    bo = vpack_ref[:, BO_OFF:BO_OFF + EMBED]                                       # (1, 32)
    attended = jnp.dot(attn, wo, preferred_element_type=jnp.float32) + bo

    # ---- residual + norm1 ----
    g1 = vpack_ref[:, G1_OFF:G1_OFF + EMBED]
    be1 = vpack_ref[:, BE1_OFF:BE1_OFF + EMBED]
    x1 = _layernorm(attended + x, g1, be1)

    # ---- feed-forward: Linear(E, 4E) -> GELU -> Linear(4E, E) (+ Dropout = identity at eval) ----
    w1 = wpack_ref[:, W1_OFF:W1_OFF + FF]                                          # (32, 128)
    bf1 = vpack_ref[:, BF1_OFF:BF1_OFF + FF]                                       # (1, 128)
    hdn = _gelu_exact(jnp.dot(x1, w1, preferred_element_type=jnp.float32) + bf1)   # (16, 128)
    bf2 = vpack_ref[:, BF2_OFF:BF2_OFF + EMBED]
    ff = jnp.dot(hdn, w2_ref[...], preferred_element_type=jnp.float32) + bf2       # (16, 32)

    # ---- residual + norm2 ----
    g2 = vpack_ref[:, G2_OFF:G2_OFF + EMBED]
    be2 = vpack_ref[:, BE2_OFF:BE2_OFF + EMBED]
    o_ref[...] = _layernorm(ff + x1, g2, be2)


def _pad_lanes(a, width=LANE):
    assert a.ndim == 2 and a.shape[-1] <= width
    return jnp.pad(a, ((0, 0), (0, width - a.shape[-1])))


def transformer_block(x_bse, params):
    """x_bse: (BATCH, SEQ, EMBED) float32. Returns (BATCH, SEQ, EMBED)."""
    (wqT, wkT, wvT, bq, bk, bv, woT, bo,
     g1, be1, g2, be2, w1T, bf1, w2T, bf2) = params
    N, L, E = x_bse.shape
    assert (N, L, E) == (BATCH, SEQ, EMBED)

    # --- wrapper-side packing (free XLA ops, done once under jit in real use) ---
    inv_sqrt_d = 1.0 / math.sqrt(HEAD_DIM)                   # attention scale folded into Wq / bq
    wqkv = jnp.concatenate([wqT * inv_sqrt_d, wkT, wvT], axis=1)      # (E, 3E)
    bqkv = jnp.concatenate([bq * inv_sqrt_d, bk, bv], axis=1)         # (1, 3E)

    w_pack = jnp.concatenate(
        [_pad_lanes(w1T), _pad_lanes(wqkv), _pad_lanes(woT)], axis=1)             # (32, 384)
    vec_pack = jnp.concatenate(
        [_pad_lanes(v) for v in (bf1, bqkv, bo, g1, be1, g2, be2, bf2)], axis=1)  # (1, 1024)
    assert w_pack.shape == (EMBED, 3 * LANE) and vec_pack.shape == (1, 8 * LANE)

    # Kernel assumes row order r = b*SEQ + l (batch-first contiguous flatten).  Do not change
    # this without also changing the same-batch mask construction inside the kernel.
    x_flat = x_bse.reshape(N * L, E)

    vmem = pl.BlockSpec(memory_space=pltpu.MemorySpace.VMEM)
    out_flat = pl.pallas_call(
        transformer_block_kernel,
        out_shape=jax.ShapeDtypeStruct((N * L, E), jnp.float32),
        in_specs=[vmem] * 4,
        out_specs=vmem,
    )(x_flat, w_pack, w2T, vec_pack)
    return out_flat.reshape(N, L, E)


def reference(x_bse, params):
    (wqT, wkT, wvT, bq, bk, bv, woT, bo,
     g1, be1, g2, be2, w1T, bf1, w2T, bf2) = params
    q = x_bse @ wqT + bq
    k = x_bse @ wkT + bk
    v = x_bse @ wvT + bv
    B, L, E = x_bse.shape

    def split_heads(t):
        return t.reshape(B, L, HEADS, HEAD_DIM).transpose(0, 2, 1, 3)

    qh, kh, vh = split_heads(q), split_heads(k), split_heads(v)
    s = jnp.einsum("bhqd,bhkd->bhqk", qh, kh) / math.sqrt(HEAD_DIM)
    p = jax.nn.softmax(s, axis=-1)
    attn = jnp.einsum("bhqk,bhkd->bhqd", p, vh).transpose(0, 2, 1, 3).reshape(B, L, E)
    attended = attn @ woT + bo
    x1 = _layernorm(attended + x_bse, g1, be1)
    ff = _gelu_exact(x1 @ w1T + bf1) @ w2T + bf2
    return _layernorm(ff + x1, g2, be2)


def init_params(key):
    ks = jax.random.split(key, 8)
    scale = 0.1
    wqT = scale * jax.random.normal(ks[0], (EMBED, EMBED), jnp.float32)
    wkT = scale * jax.random.normal(ks[1], (EMBED, EMBED), jnp.float32)
    wvT = scale * jax.random.normal(ks[2], (EMBED, EMBED), jnp.float32)
    bq = scale * jax.random.normal(ks[3], (1, EMBED), jnp.float32)
    bk = scale * jax.random.normal(ks[4], (1, EMBED), jnp.float32)
    bv = scale * jax.random.normal(ks[5], (1, EMBED), jnp.float32)
    woT = scale * jax.random.normal(ks[6], (EMBED, EMBED), jnp.float32)
    bo = jnp.zeros((1, EMBED), jnp.float32)
    # LayerNorm defaults: weight=1, bias=0
    g1 = jnp.ones((1, EMBED), jnp.float32)
    be1 = jnp.zeros((1, EMBED), jnp.float32)
    g2 = jnp.ones((1, EMBED), jnp.float32)
    be2 = jnp.zeros((1, EMBED), jnp.float32)
    k7, k8 = jax.random.split(ks[7])
    w1T = scale * jax.random.normal(k7, (EMBED, FF), jnp.float32)
    bf1 = jnp.zeros((1, FF), jnp.float32)
    w2T = scale * jax.random.normal(k8, (FF, EMBED), jnp.float32)
    bf2 = jnp.zeros((1, EMBED), jnp.float32)
    return (wqT, wkT, wvT, bq, bk, bv, woT, bo,
            g1, be1, g2, be2, w1T, bf1, w2T, bf2)


if __name__ == "__main__":
    key = jax.random.PRNGKey(0)
    kx, kp = jax.random.split(key)
    # PyTorch MHA layout is (seq, batch, embed); build that then transpose to batch-first.
    x_sbe = jax.random.normal(kx, (SEQ, BATCH, EMBED), jnp.float32)
    x_bse = jnp.transpose(x_sbe, (1, 0, 2))
    params = init_params(kp)

    out = transformer_block(x_bse, params)
    out = jax.block_until_ready(out)

    ref = reference(x_bse, params)
    assert out.shape == (BATCH, SEQ, EMBED)
    assert jnp.allclose(out, ref, atol=1e-4, rtol=1e-4), float(jnp.max(jnp.abs(out - ref)))
    print("KERNEL_OK")
</pallas_src>

<mosaic_0001>
module attributes {stable_mosaic.version = 11 : i64} {
  func.func @transformer_block_kernel(%arg0: memref<16x32xf32, #tpu.memory_space<vmem>>, %arg1: memref<32x384xf32, #tpu.memory_space<vmem>>, %arg2: memref<128x32xf32, #tpu.memory_space<vmem>>, %arg3: memref<1x1024xf32, #tpu.memory_space<vmem>>, %arg4: memref<16x32xf32, #tpu.memory_space<vmem>>) attributes {dimension_semantics = [], scalar_prefetch = 0 : i64, scratch_operands = 0 : i64, tpu.core_type = #tpu.core_type<tc>} {
    %c0 = arith.constant 0 : index
    %c0_0 = arith.constant 0 : index
    %0 = vector.load %arg0[%c0, %c0_0] : memref<16x32xf32, #tpu.memory_space<vmem>>, vector<16x32xf32>
    %c0_1 = arith.constant 0 : index
    %c128 = arith.constant 128 : index
    %1 = vector.load %arg1[%c0_1, %c128] : memref<32x384xf32, #tpu.memory_space<vmem>>, vector<32x96xf32>
    %c0_2 = arith.constant 0 : index
    %c128_3 = arith.constant 128 : index
    %2 = vector.load %arg3[%c0_2, %c128_3] : memref<1x1024xf32, #tpu.memory_space<vmem>>, vector<1x96xf32>
    %cst = arith.constant dense<0.000000e+00> : vector<16x96xf32>
    %3 = tpu.matmul %0, %1, %cst {dimension_numbers = #tpu.dot_dimension_numbers<[1], [0], [0], [1], [0, 0, 1, 1], [], []>} : vector<16x32xf32>, vector<32x96xf32>, vector<16x96xf32> -> vector<16x96xf32>
    %4 = vector.broadcast %2 : vector<1x96xf32> to vector<16x96xf32>
    %5 = arith.addf %3, %4 : vector<16x96xf32>
    %6 = tpu.iota {dimensions = array<i32: 0>} : vector<2x8x16xi32>
    %7 = vector.shape_cast %6 : vector<2x8x16xi32> to vector<16x16xi32>
    %8 = tpu.iota {dimensions = array<i32: 1>} : vector<16x2x8xi32>
    %9 = vector.shape_cast %8 : vector<16x2x8xi32> to vector<16x16xi32>
    %10 = arith.cmpi eq, %7, %9 : vector<16x16xi32>
    %11 = vector.extract_strided_slice %5 {offsets = [0, 0], sizes = [16, 8], strides = [1, 1]} : vector<16x96xf32> to vector<16x8xf32>
    %12 = vector.extract_strided_slice %5 {offsets = [0, 32], sizes = [16, 8], strides = [1, 1]} : vector<16x96xf32> to vector<16x8xf32>
    %13 = vector.extract_strided_slice %5 {offsets = [0, 64], sizes = [16, 8], strides = [1, 1]} : vector<16x96xf32> to vector<16x8xf32>
    %cst_4 = arith.constant dense<0.000000e+00> : vector<16x16xf32>
    %14 = tpu.matmul %11, %12, %cst_4 {dimension_numbers = #tpu.dot_dimension_numbers<[1], [1], [0], [0], [0, 0, 1, 0], [], []>} : vector<16x8xf32>, vector<16x8xf32>, vector<16x16xf32> -> vector<16x16xf32>
    %cst_5 = arith.constant -1.000000e+30 : f32
    %15 = vector.broadcast %cst_5 : f32 to vector<16x16xf32>
    %16 = arith.select %10, %14, %15 : vector<16x16xi1>, vector<16x16xf32>
    %cst_6 = arith.constant dense<0xFF800000> : vector<16xf32>
    %17 = vector.multi_reduction <maximumf>, %16, %cst_6 [1] : vector<16x16xf32> to vector<16xf32>
    %18 = vector.shape_cast %17 : vector<16xf32> to vector<16x1xf32>
    %19 = vector.broadcast %18 : vector<16x1xf32> to vector<16x16xf32>
    %20 = arith.subf %16, %19 : vector<16x16xf32>
    %21 = math.exp %20 : vector<16x16xf32>
    %cst_7 = arith.constant dense<0.000000e+00> : vector<16xf32>
    %22 = vector.multi_reduction <add>, %21, %cst_7 [1] : vector<16x16xf32> to vector<16xf32>
    %23 = vector.shape_cast %22 : vector<16xf32> to vector<16x1xf32>
    %cst_8 = arith.constant 1.000000e+00 : f32
    %24 = vector.broadcast %cst_8 : f32 to vector<16x1xf32>
    %25 = arith.divf %24, %23 : vector<16x1xf32>
    %26 = vector.broadcast %25 : vector<16x1xf32> to vector<16x16xf32>
    %27 = arith.mulf %21, %26 : vector<16x16xf32>
    %cst_9 = arith.constant dense<0.000000e+00> : vector<16x8xf32>
    %28 = tpu.matmul %27, %13, %cst_9 {dimension_numbers = #tpu.dot_dimension_numbers<[1], [0], [0], [1], [0, 0, 1, 1], [], []>} : vector<16x16xf32>, vector<16x8xf32>, vector<16x8xf32> -> vector<16x8xf32>
    %29 = vector.extract_strided_slice %5 {offsets = [0, 8], sizes = [16, 8], strides = [1, 1]} : vector<16x96xf32> to vector<16x8xf32>
    %30 = vector.extract_strided_slice %5 {offsets = [0, 40], sizes = [16, 8], strides = [1, 1]} : vector<16x96xf32> to vector<16x8xf32>
    %31 = vector.extract_strided_slice %5 {offsets = [0, 72], sizes = [16, 8], strides = [1, 1]} : vector<16x96xf32> to vector<16x8xf32>
    %cst_10 = arith.constant dense<0.000000e+00> : vector<16x16xf32>
    %32 = tpu.matmul %29, %30, %cst_10 {dimension_numbers = #tpu.dot_dimension_numbers<[1], [1], [0], [0], [0, 0, 1, 0], [], []>} : vector<16x8xf32>, vector<16x8xf32>, vector<16x16xf32> -> vector<16x16xf32>
    %cst_11 = arith.constant -1.000000e+30 : f32
    %33 = vector.broadcast %cst_11 : f32 to vector<16x16xf32>
    %34 = arith.select %10, %32, %33 : vector<16x16xi1>, vector<16x16xf32>
    %cst_12 = arith.constant dense<0xFF800000> : vector<16xf32>
    %35 = vector.multi_reduction <maximumf>, %34, %cst_12 [1] : vector<16x16xf32> to vector<16xf32>
    %36 = vector.shape_cast %35 : vector<16xf32> to vector<16x1xf32>
    %37 = vector.broadcast %36 : vector<16x1xf32> to vector<16x16xf32>
    %38 = arith.subf %34, %37 : vector<16x16xf32>
    %39 = math.exp %38 : vector<16x16xf32>
    %cst_13 = arith.constant dense<0.000000e+00> : vector<16xf32>
    %40 = vector.multi_reduction <add>, %39, %cst_13 [1] : vector<16x16xf32> to vector<16xf32>
    %41 = vector.shape_cast %40 : vector<16xf32> to vector<16x1xf32>
    %cst_14 = arith.constant 1.000000e+00 : f32
    %42 = vector.broadcast %cst_14 : f32 to vector<16x1xf32>
    %43 = arith.divf %42, %41 : vector<16x1xf32>
    %44 = vector.broadcast %43 : vector<16x1xf32> to vector<16x16xf32>
    %45 = arith.mulf %39, %44 : vector<16x16xf32>
    %cst_15 = arith.constant dense<0.000000e+00> : vector<16x8xf32>
    %46 = tpu.matmul %45, %31, %cst_15 {dimension_numbers = #tpu.dot_dimension_numbers<[1], [0], [0], [1], [0, 0, 1, 1], [], []>} : vector<16x16xf32>, vector<16x8xf32>, vector<16x8xf32> -> vector<16x8xf32>
    %47 = vector.extract_strided_slice %5 {offsets = [0, 16], sizes = [16, 8], strides = [1, 1]} : vector<16x96xf32> to vector<16x8xf32>
    %48 = vector.extract_strided_slice %5 {offsets = [0, 48], sizes = [16, 8], strides = [1, 1]} : vector<16x96xf32> to vector<16x8xf32>
    %49 = vector.extract_strided_slice %5 {offsets = [0, 80], sizes = [16, 8], strides = [1, 1]} : vector<16x96xf32> to vector<16x8xf32>
    %cst_16 = arith.constant dense<0.000000e+00> : vector<16x16xf32>
    %50 = tpu.matmul %47, %48, %cst_16 {dimension_numbers = #tpu.dot_dimension_numbers<[1], [1], [0], [0], [0, 0, 1, 0], [], []>} : vector<16x8xf32>, vector<16x8xf32>, vector<16x16xf32> -> vector<16x16xf32>
    %cst_17 = arith.constant -1.000000e+30 : f32
    %51 = vector.broadcast %cst_17 : f32 to vector<16x16xf32>
    %52 = arith.select %10, %50, %51 : vector<16x16xi1>, vector<16x16xf32>
    %cst_18 = arith.constant dense<0xFF800000> : vector<16xf32>
    %53 = vector.multi_reduction <maximumf>, %52, %cst_18 [1] : vector<16x16xf32> to vector<16xf32>
    %54 = vector.shape_cast %53 : vector<16xf32> to vector<16x1xf32>
    %55 = vector.broadcast %54 : vector<16x1xf32> to vector<16x16xf32>
    %56 = arith.subf %52, %55 : vector<16x16xf32>
    %57 = math.exp %56 : vector<16x16xf32>
    %cst_19 = arith.constant dense<0.000000e+00> : vector<16xf32>
    %58 = vector.multi_reduction <add>, %57, %cst_19 [1] : vector<16x16xf32> to vector<16xf32>
    %59 = vector.shape_cast %58 : vector<16xf32> to vector<16x1xf32>
    %cst_20 = arith.constant 1.000000e+00 : f32
    %60 = vector.broadcast %cst_20 : f32 to vector<16x1xf32>
    %61 = arith.divf %60, %59 : vector<16x1xf32>
    %62 = vector.broadcast %61 : vector<16x1xf32> to vector<16x16xf32>
    %63 = arith.mulf %57, %62 : vector<16x16xf32>
    %cst_21 = arith.constant dense<0.000000e+00> : vector<16x8xf32>
    %64 = tpu.matmul %63, %49, %cst_21 {dimension_numbers = #tpu.dot_dimension_numbers<[1], [0], [0], [1], [0, 0, 1, 1], [], []>} : vector<16x16xf32>, vector<16x8xf32>, vector<16x8xf32> -> vector<16x8xf32>
    %65 = vector.extract_strided_slice %5 {offsets = [0, 24], sizes = [16, 8], strides = [1, 1]} : vector<16x96xf32> to vector<16x8xf32>
    %66 = vector.extract_strided_slice %5 {offsets = [0, 56], sizes = [16, 8], strides = [1, 1]} : vector<16x96xf32> to vector<16x8xf32>
    %67 = vector.extract_strided_slice %5 {offsets = [0, 88], sizes = [16, 8], strides = [1, 1]} : vector<16x96xf32> to vector<16x8xf32>
    %cst_22 = arith.constant dense<0.000000e+00> : vector<16x16xf32>
    %68 = tpu.matmul %65, %66, %cst_22 {dimension_numbers = #tpu.dot_dimension_numbers<[1], [1], [0], [0], [0, 0, 1, 0], [], []>} : vector<16x8xf32>, vector<16x8xf32>, vector<16x16xf32> -> vector<16x16xf32>
    %cst_23 = arith.constant -1.000000e+30 : f32
    %69 = vector.broadcast %cst_23 : f32 to vector<16x16xf32>
    %70 = arith.select %10, %68, %69 : vector<16x16xi1>, vector<16x16xf32>
    %cst_24 = arith.constant dense<0xFF800000> : vector<16xf32>
    %71 = vector.multi_reduction <maximumf>, %70, %cst_24 [1] : vector<16x16xf32> to vector<16xf32>
    %72 = vector.shape_cast %71 : vector<16xf32> to vector<16x1xf32>
    %73 = vector.broadcast %72 : vector<16x1xf32> to vector<16x16xf32>
    %74 = arith.subf %70, %73 : vector<16x16xf32>
    %75 = math.exp %74 : vector<16x16xf32>
    %cst_25 = arith.constant dense<0.000000e+00> : vector<16xf32>
    %76 = vector.multi_reduction <add>, %75, %cst_25 [1] : vector<16x16xf32> to vector<16xf32>
    %77 = vector.shape_cast %76 : vector<16xf32> to vector<16x1xf32>
    %cst_26 = arith.constant 1.000000e+00 : f32
    %78 = vector.broadcast %cst_26 : f32 to vector<16x1xf32>
    %79 = arith.divf %78, %77 : vector<16x1xf32>
    %80 = vector.broadcast %79 : vector<16x1xf32> to vector<16x16xf32>
    %81 = arith.mulf %75, %80 : vector<16x16xf32>
    %cst_27 = arith.constant dense<0.000000e+00> : vector<16x8xf32>
    %82 = tpu.matmul %81, %67, %cst_27 {dimension_numbers = #tpu.dot_dimension_numbers<[1], [0], [0], [1], [0, 0, 1, 1], [], []>} : vector<16x16xf32>, vector<16x8xf32>, vector<16x8xf32> -> vector<16x8xf32>
    %83 = tpu.concatenate %28, %46, %64, %82 in 1 : vector<16x8xf32>, vector<16x8xf32>, vector<16x8xf32>, vector<16x8xf32> -> vector<16x32xf32>
    %c0_28 = arith.constant 0 : index
    %c256 = arith.constant 256 : index
    %84 = vector.load %arg1[%c0_28, %c256] : memref<32x384xf32, #tpu.memory_space<vmem>>, vector<32x32xf32>
    %c0_29 = arith.constant 0 : index
    %c256_30 = arith.constant 256 : index
    %85 = vector.load %arg3[%c0_29, %c256_30] : memref<1x1024xf32, #tpu.memory_space<vmem>>, vector<1x32xf32>
    %cst_31 = arith.constant dense<0.000000e+00> : vector<16x32xf32>
    %86 = tpu.matmul %83, %84, %cst_31 {dimension_numbers = #tpu.dot_dimension_numbers<[1], [0], [0], [1], [0, 0, 1, 1], [], []>} : vector<16x32xf32>, vector<32x32xf32>, vector<16x32xf32> -> vector<16x32xf32>
    %87 = vector.broadcast %85 : vector<1x32xf32> to vector<16x32xf32>
    %88 = arith.addf %86, %87 : vector<16x32xf32>
    %c0_32 = arith.constant 0 : index
    %c384 = arith.constant 384 : index
    %89 = vector.load %arg3[%c0_32, %c384] : memref<1x1024xf32, #tpu.memory_space<vmem>>, vector<1x32xf32>
    %c0_33 = arith.constant 0 : index
    %c512 = arith.constant 512 : index
    %90 = vector.load %arg3[%c0_33, %c512] : memref<1x1024xf32, #tpu.memory_space<vmem>>, vector<1x32xf32>
    %91 = arith.addf %88, %0 : vector<16x32xf32>
    %cst_34 = arith.constant dense<0.000000e+00> : vector<16xf32>
    %92 = vector.multi_reduction <add>, %91, %cst_34 [1] : vector<16x32xf32> to vector<16xf32>
    %93 = vector.shape_cast %92 : vector<16xf32> to vector<16x1xf32>
    %cst_35 = arith.constant 3.200000e+01 : f32
    %94 = vector.broadcast %cst_35 : f32 to vector<16x1xf32>
    %95 = arith.divf %93, %94 : vector<16x1xf32>
    %96 = vector.broadcast %95 : vector<16x1xf32> to vector<16x32xf32>
    %97 = arith.subf %91, %96 : vector<16x32xf32>
    %98 = arith.mulf %97, %97 : vector<16x32xf32>
    %cst_36 = arith.constant dense<0.000000e+00> : vector<16xf32>
    %99 = vector.multi_reduction <add>, %98, %cst_36 [1] : vector<16x32xf32> to vector<16xf32>
    %100 = vector.shape_cast %99 : vector<16xf32> to vector<16x1xf32>
    %cst_37 = arith.constant 3.200000e+01 : f32
    %101 = vector.broadcast %cst_37 : f32 to vector<16x1xf32>
    %102 = arith.divf %100, %101 : vector<16x1xf32>
    %103 = vector.broadcast %95 : vector<16x1xf32> to vector<16x32xf32>
    %104 = arith.subf %91, %103 : vector<16x32xf32>
    %cst_38 = arith.constant 9.99999974E-6 : f32
    %105 = vector.broadcast %cst_38 : f32 to vector<16x1xf32>
    %106 = arith.addf %102, %105 : vector<16x1xf32>
    %107 = math.rsqrt %106 : vector<16x1xf32>
    %108 = vector.broadcast %107 : vector<16x1xf32> to vector<16x32xf32>
    %109 = arith.mulf %104, %108 : vector<16x32xf32>
    %110 = vector.broadcast %89 : vector<1x32xf32> to vector<16x32xf32>
    %111 = arith.mulf %109, %110 : vector<16x32xf32>
    %112 = vector.broadcast %90 : vector<1x32xf32> to vector<16x32xf32>
    %113 = arith.addf %111, %112 : vector<16x32xf32>
    %c0_39 = arith.constant 0 : index
    %c0_40 = arith.constant 0 : index
    %114 = vector.load %arg1[%c0_39, %c0_40] : memref<32x384xf32, #tpu.memory_space<vmem>>, vector<32x128xf32>
    %c0_41 = arith.constant 0 : index
    %c0_42 = arith.constant 0 : index
    %115 = vector.load %arg3[%c0_41, %c0_42] : memref<1x1024xf32, #tpu.memory_space<vmem>>, vector<1x128xf32>
    %cst_43 = arith.constant dense<0.000000e+00> : vector<16x128xf32>
    %116 = tpu.matmul %113, %114, %cst_43 {dimension_numbers = #tpu.dot_dimension_numbers<[1], [0], [0], [1], [0, 0, 1, 1], [], []>} : vector<16x32xf32>, vector<32x128xf32>, vector<16x128xf32> -> vector<16x128xf32>
    %117 = vector.broadcast %115 : vector<1x128xf32> to vector<16x128xf32>
    %118 = arith.addf %116, %117 : vector<16x128xf32>
    %cst_44 = arith.constant 5.000000e-01 : f32
    %119 = vector.broadcast %cst_44 : f32 to vector<16x128xf32>
    %120 = arith.mulf %119, %118 : vector<16x128xf32>
    %cst_45 = arith.constant 1.41421354 : f32
    %121 = vector.broadcast %cst_45 : f32 to vector<16x128xf32>
    %122 = arith.divf %118, %121 : vector<16x128xf32>
    %123 = math.erf %122 : vector<16x128xf32>
    %cst_46 = arith.constant 1.000000e+00 : f32
    %124 = vector.broadcast %cst_46 : f32 to vector<16x128xf32>
    %125 = arith.addf %124, %123 : vector<16x128xf32>
    %126 = arith.mulf %120, %125 : vector<16x128xf32>
    %c0_47 = arith.constant 0 : index
    %c896 = arith.constant 896 : index
    %127 = vector.load %arg3[%c0_47, %c896] : memref<1x1024xf32, #tpu.memory_space<vmem>>, vector<1x32xf32>
    %c0_48 = arith.constant 0 : index
    %c0_49 = arith.constant 0 : index
    %128 = vector.load %arg2[%c0_48, %c0_49] : memref<128x32xf32, #tpu.memory_space<vmem>>, vector<128x32xf32>
    %cst_50 = arith.constant dense<0.000000e+00> : vector<16x32xf32>
    %129 = tpu.matmul %126, %128, %cst_50 {dimension_numbers = #tpu.dot_dimension_numbers<[1], [0], [0], [1], [0, 0, 1, 1], [], []>} : vector<16x128xf32>, vector<128x32xf32>, vector<16x32xf32> -> vector<16x32xf32>
    %130 = vector.broadcast %127 : vector<1x32xf32> to vector<16x32xf32>
    %131 = arith.addf %129, %130 : vector<16x32xf32>
    %c0_51 = arith.constant 0 : index
    %c640 = arith.constant 640 : index
    %132 = vector.load %arg3[%c0_51, %c640] : memref<1x1024xf32, #tpu.memory_space<vmem>>, vector<1x32xf32>
    %c0_52 = arith.constant 0 : index
    %c768 = arith.constant 768 : index
    %133 = vector.load %arg3[%c0_52, %c768] : memref<1x1024xf32, #tpu.memory_space<vmem>>, vector<1x32xf32>
    %134 = arith.addf %131, %113 : vector<16x32xf32>
    %cst_53 = arith.constant dense<0.000000e+00> : vector<16xf32>
    %135 = vector.multi_reduction <add>, %134, %cst_53 [1] : vector<16x32xf32> to vector<16xf32>
    %136 = vector.shape_cast %135 : vector<16xf32> to vector<16x1xf32>
    %cst_54 = arith.constant 3.200000e+01 : f32
    %137 = vector.broadcast %cst_54 : f32 to vector<16x1xf32>
    %138 = arith.divf %136, %137 : vector<16x1xf32>
    %139 = vector.broadcast %138 : vector<16x1xf32> to vector<16x32xf32>
    %140 = arith.subf %134, %139 : vector<16x32xf32>
    %141 = arith.mulf %140, %140 : vector<16x32xf32>
    %cst_55 = arith.constant dense<0.000000e+00> : vector<16xf32>
    %142 = vector.multi_reduction <add>, %141, %cst_55 [1] : vector<16x32xf32> to vector<16xf32>
    %143 = vector.shape_cast %142 : vector<16xf32> to vector<16x1xf32>
    %cst_56 = arith.constant 3.200000e+01 : f32
    %144 = vector.broadcast %cst_56 : f32 to vector<16x1xf32>
    %145 = arith.divf %143, %144 : vector<16x1xf32>
    %146 = vector.broadcast %138 : vector<16x1xf32> to vector<16x32xf32>
    %147 = arith.subf %134, %146 : vector<16x32xf32>
    %cst_57 = arith.constant 9.99999974E-6 : f32
    %148 = vector.broadcast %cst_57 : f32 to vector<16x1xf32>
    %149 = arith.addf %145, %148 : vector<16x1xf32>
    %150 = math.rsqrt %149 : vector<16x1xf32>
    %151 = vector.broadcast %150 : vector<16x1xf32> to vector<16x32xf32>
    %152 = arith.mulf %147, %151 : vector<16x32xf32>
    %153 = vector.broadcast %132 : vector<1x32xf32> to vector<16x32xf32>
    %154 = arith.mulf %152, %153 : vector<16x32xf32>
    %155 = vector.broadcast %133 : vector<1x32xf32> to vector<16x32xf32>
    %156 = arith.addf %154, %155 : vector<16x32xf32>
    %c0_58 = arith.constant 0 : index
    %c0_59 = arith.constant 0 : index
    %157 = vector.load %arg4[%c0_58, %c0_59] : memref<16x32xf32, #tpu.memory_space<vmem>>, vector<16x32xf32>
    tpu.vector_store %arg4[%c0_58, %c0_59], %156 {strides = array<i32>} : memref<16x32xf32, #tpu.memory_space<vmem>>, vector<16x32xf32>,
    return
  }
}

</mosaic_0001>

<llo_original>
// kernel: tpu_custom_call.1
$region0: #{tpu_custom_call.1}
  #allocation0 [shape = 'u32[]', space=smem, size = 0x4, offset = 0x4, fixed_abs, tag = 'smem constant byte address 0x4 - core index']
  #allocation1 [shape = 'u32[72,128]{1,0:T(1,128)}', space=vmem, size = 0x9000, scoped, tag = 'internal scratch']
  %s0 = inlined_call_operand.vmem [shape: f32[16,32], index: 0, kind: input, shape index: {}]
  %s1 = inlined_call_operand.vmem [shape: f32[32,384], index: 1, kind: input, shape index: {}]
  %s2 = inlined_call_operand.vmem [shape: f32[128,32], index: 2, kind: input, shape index: {}]
  %s3 = inlined_call_operand.vmem [shape: f32[1,1024], index: 3, kind: input, shape index: {}]
  %s4 = inlined_call_operand.hbm [shape: f32[16,32], index: 4, kind: output, shape index: {}]
  %s5 = sld [smem:[#allocation0]]
  $region26: #{tpu_custom_call.1} parent=0
    _
  %s7 = ssub.s32 1, %s5
  %s8 = scalar_select 0, %s7, %s5
  $region1: #{tpu_custom_call.1} parent=0
    #allocation2 [shape = 'u8[8192]{0}', space=vmem, size = 0x2000, scoped, tag = 'output window, operand 0, single buffered']
    #allocation3 [shape = 's32[1]{0}', space=sflag, size = 0x4, scoped, tag = 'scoped memory for tpu_custom_call.1']
    %9 = vsyncpa [#allocation3], 0
    // Predicated region
    $region2: #{tpu_custom_call.1} parent=1 // pred_check
      _
    $region3: #{tpu_custom_call.1} parent=1 // pred_check_branch
      %11 = sbr.rel (0) target = $region5
    $region4: #{tpu_custom_call.1} parent=1 // pred_region
      _
    $region5: #{tpu_custom_call.1} parent=1 // pred_fallthru
      _
    // Predicated region
    $region6: #{tpu_custom_call.1} parent=1 // pred_check
      _
    $region7: #{tpu_custom_call.1} parent=1 // pred_check_branch
      %13 = sbr.rel (0) target = $region9
    $region8: #{tpu_custom_call.1} parent=1 // pred_region
      _
    $region9: #{tpu_custom_call.1} parent=1 // pred_fallthru
      _
    // Predicated region
    $region10: #{tpu_custom_call.1} parent=1 // pred_check
      _
    $region11: #{tpu_custom_call.1} parent=1 // pred_check_branch
      %15 = sbr.rel (0) target = $region13
    $region12: #{tpu_custom_call.1} parent=1 // pred_region
      _
    $region13: #{tpu_custom_call.1} parent=1 // pred_fallthru
      _
    // Predicated region
    $region14: #{tpu_custom_call.1} parent=1 // pred_check
      _
    $region15: #{tpu_custom_call.1} parent=1 // pred_check_branch
      %17 = sbr.rel (0) target = $region17
    $region16: #{tpu_custom_call.1} parent=1 // pred_region
      _
    $region17: #{tpu_custom_call.1} parent=1 // pred_fallthru
      _
    %v18 = vld [vmem:[%s0] sm:$0xff]
    %v19 = vld [vmem:[%s0 + $0x8] sm:$0xff]
    %v20 = vld [vmem:[%s1 + $0x8] sm:$0xff]
    %v21 = vld [vmem:[%s1 + $0x20] sm:$0xff]
    %v22 = vld [vmem:[%s1 + $0x38] sm:$0xff]
    %v23 = vld [vmem:[%s1 + $0x50] sm:$0xff]
    %v24 = vld [vmem:[%s3 + $0x1] sm:$0x1]
    %v26 = vperm.slane %v24, 0
    %vm28 = vcmask 261120
    %v30 = vsel %vm28, %v18, 0
    %v33 = vsel %vm28, %v19, 0
    %35 = vmatpush.msra.mxu0 0.0
    %36 = vmatpush.msra.mxu0 0.0
    %37 = vmatpush.msra.mxu0 0.0
    %38 = vmatpush.msra.mxu0 0.0
    %39 = vmatpush.msra.mxu0 0.0
    %40 = vmatpush.msra.mxu0 0.0
    %41 = vmatpush.msra.mxu0 0.0
    %42 = vmatpush.msra.mxu0 0.0
    %43 = vmatpush.msra.mxu0 0.0
    %44 = vmatpush.msra.mxu0 0.0
    %45 = vmatpush.msra.mxu0 0.0
    %46 = vmatpush.msra.mxu0 0.0
    %47 = vmatpush.msra.mxu0 %v23
    %48 = vmatpush.msra.mxu0 %v22
    %49 = vmatpush.msra.mxu0 %v21
    %50 = vmatpush.msra.mxu0 %v20
    %51 = vmatmul.f32.gmra.mxu0 %v30
    %v52 = vpop.f32.mrf.mxu0
    %v53 = vadd.f32 %v26, %v52
    %54 = vmatmul.f32.gmra.mxu0 %v33
    %v55 = vpop.f32.mrf.mxu0
    %v56 = vadd.f32 %v26, %v55
    %57 = vdwg.mxu0
    %v58 = vlaneseq
    %v59 = vshrl.u32 %v58, 7
    %v60 = vrot.slane %v59, 4
    %vm61 = vcmask 1047556
    %v62 = vsel %vm61, %v60, %v59
    %v64 = vunpack.c.l.s4 1983009808
    %v65 = vunpack.c.0.s8 %v64
    %v66 = vperm.slane %v62, %v65
    %v67 = vrot.slane %v66, 4
    %v68 = vsel %vm61, %v67, %v66
    %v70 = vunpack.c.l.s4 1934713408
    %v71 = vunpack.c.0.s8 %v70
    %v72 = vperm.slane %v68, %v71
    %v73 = vrot.slane %v72, 4
    %v74 = vsel %vm61, %v73, %v72
    %v75 = vsel %vm61, %v72, %v73
    %76 = vrot.lane.b32.xlu0 %v75, 8
    %v77 = vpop.permute.xlu0 %76
    %vm78 = vcmask 64512
    %v79 = vsel %vm78, %v74, %v77
    %vm80 = vcmp.eq.s32.totalorder %v79, 0
    %vm81 = vcmp.eq.s32.totalorder %v79, 1
    %84 = vrot.lane.b32.xlu0 %v53, 96
    %v85 = vpop.permute.xlu0 %84
    %86 = vrot.lane.b32.xlu0 %v56, 96
    %v87 = vpop.permute.xlu0 %86
    %v88 = vsel %vm78, %v53, 0
    %v90 = vsel %vm78, %v56, 0
    %v92 = vsel %vm78, %v85, 0
    %v94 = vsel %vm78, %v87, 0
    %96 = vmatpush.xpose.msra.mxu0 0.0
    %97 = vmatpush.xpose.msra.mxu0 0.0
    %98 = vmatpush.xpose.msra.mxu0 0.0
    %99 = vmatpush.xpose.msra.mxu0 0.0
    %100 = vmatpush.xpose.msra.mxu0 0.0
    %101 = vmatpush.xpose.msra.mxu0 0.0
    %102 = vmatpush.xpose.msra.mxu0 0.0
    %103 = vmatpush.xpose.msra.mxu0 0.0
    %104 = vmatpush.xpose.msra.mxu0 0.0
    %105 = vmatpush.xpose.msra.mxu0 0.0
    %106 = vmatpush.xpose.msra.mxu0 0.0
    %107 = vmatpush.xpose.msra.mxu0 0.0
    %108 = vmatpush.xpose.msra.mxu0 0.0
    %109 = vmatpush.xpose.msra.mxu0 0.0
    %110 = vmatpush.xpose.msra.mxu0 %v94
    %111 = vmatpush.xpose.msra.mxu0 %v92
    %112 = vmatmul.f32.gmra.mxu0 %v88
    %v113 = vpop.f32.mrf.mxu0
    %v114 = vadd.f32 0.0, %v113
    %115 = vmatmul.f32.gmra.mxu0 %v90
    %v116 = vpop.f32.mrf.mxu0
    %v117 = vadd.f32 0.0, %v116
    %118 = vdwg.mxu0
    %v119 = vsel %vm80, %v114, -1e+30
    %v120 = vsel %vm81, %v117, -1e+30
    %vm121 = vcmask 130048
    %v122 = vsel %vm121, %v119, -inf
    %123 = vmax.xlane.f32.xlu0 %v122
    %v124 = vpop.xlane.xlu0 %123
    %v125 = vsel %vm121, %v120, -inf
    %126 = vmax.xlane.f32.xlu0 %v125
    %v127 = vpop.xlane.xlu0 %126
    %v128 = vsub.f32 %v119, %v124
    %v129 = vsub.f32 %v120, %v127
    %v130 = vmul.f32 %v128, 1.442695
    %v131 = vpow.pop %v130
    %v132 = vmul.f32 %v129, 1.442695
    %v133 = vpow.pop %v132
    %v134 = vsel %vm121, %v131, 0.0
    %135 = vadd.xlane.f32.xlu0 %v134
    %v136 = vpop.xlane.xlu0 %135
    %v137 = vsel %vm121, %v133, 0.0
    %138 = vadd.xlane.f32.xlu0 %v137
    %v139 = vpop.xlane.xlu0 %138
    %v140 = vrcp.pop %v136
    %v141 = vmul.f32 %v136, %v140
    %v142 = vsub.f32 1.0, %v141
    %v143 = vmul.f32 %v140, %v142
    %v144 = vadd.f32 %v140, %v143
    %vm145 = vweird.f32 %v136
    %vm146 = vweird.f32 %v140
    %vm147 = vmor %vm145, %vm146
    %v148 = vsel %vm147, %v140, %v144
    %v149 = vand.u32 2147483647, %v136
    %vm150 = vcmp.eq.f32.partialorder %v149, 8.507059e+37
    %v151 = vand.u32 %v136, 2147483648
    %v152 = vor.u32 1.1754944e-38, %v151
    %v153 = vsel %vm150, %v152, %v148
    %v154 = vmul.f32 1.0, %v153
    %v155 = vrcp.pop %v139
    %v156 = vmul.f32 %v139, %v155
    %v157 = vsub.f32 1.0, %v156
    %v158 = vmul.f32 %v155, %v157
    %v159 = vadd.f32 %v155, %v158
    %vm160 = vweird.f32 %v139
    %vm161 = vweird.f32 %v155
    %vm162 = vmor %vm160, %vm161
    %v163 = vsel %vm162, %v155, %v159
    %v164 = vand.u32 2147483647, %v139
    %vm165 = vcmp.eq.f32.partialorder %v164, 8.507059e+37
    %v166 = vand.u32 %v139, 2147483648
    %v167 = vor.u32 1.1754944e-38, %v166
    %v168 = vsel %vm165, %v167, %v163
    %v169 = vmul.f32 1.0, %v168
    %v170 = vmul.f32 %v131, %v154
    %v171 = vmul.f32 %v133, %v169
    %172 = vrot.lane.b32.xlu0 %v53, 64
    %v173 = vpop.permute.xlu0 %172
    %174 = vrot.lane.b32.xlu0 %v56, 64
    %v175 = vpop.permute.xlu0 %174
    %v179 = vsel %vm121, %v170, 0
    %v182 = vsel %vm121, %v171, 0
    %184 = vmatpush.msra.mxu0 0.0
    %185 = vmatpush.msra.mxu0 0.0
    %186 = vmatpush.msra.mxu0 0.0
    %187 = vmatpush.msra.mxu0 0.0
    %188 = vmatpush.msra.mxu0 0.0
    %189 = vmatpush.msra.mxu0 0.0
    %190 = vmatpush.msra.mxu0 0.0
    %191 = vmatpush.msra.mxu0 0.0
    %192 = vmatpush.msra.mxu0 0.0
    %193 = vmatpush.msra.mxu0 0.0
    %194 = vmatpush.msra.mxu0 0.0
    %195 = vmatpush.msra.mxu0 0.0
    %196 = vmatpush.msra.mxu0 0.0
    %197 = vmatpush.msra.mxu0 0.0
    %198 = vmatpush.msra.mxu0 %v175
    %199 = vmatpush.msra.mxu0 %v173
    %200 = vmatmul.f32.gmra.mxu0 %v179
    %v201 = vpop.f32.mrf.mxu0
    %v202 = vadd.f32 0.0, %v201
    %203 = vmatmul.f32.gmra.mxu0 %v182
    %v204 = vpop.f32.mrf.mxu0
    %v205 = vadd.f32 0.0, %v204
    %206 = vdwg.mxu0
    %207 = vrot.lane.b32.xlu0 %v53, 120
    %v208 = vpop.permute.xlu0 %207
    %209 = vrot.lane.b32.xlu0 %v56, 120
    %v210 = vpop.permute.xlu0 %209
    %211 = vrot.lane.b32.xlu0 %v53, 88
    %v212 = vpop.permute.xlu0 %211
    %213 = vrot.lane.b32.xlu0 %v56, 88
    %v214 = vpop.permute.xlu0 %213
    %v215 = vsel %vm78, %v208, 0
    %v217 = vsel %vm78, %v210, 0
    %v219 = vsel %vm78, %v212, 0
    %v221 = vsel %vm78, %v214, 0
    %223 = vmatpush.xpose.msra.mxu0 0.0
    %224 = vmatpush.xpose.msra.mxu0 0.0
    %225 = vmatpush.xpose.msra.mxu0 0.0
    %226 = vmatpush.xpose.msra.mxu0 0.0
    %227 = vmatpush.xpose.msra.mxu0 0.0
    %228 = vmatpush.xpose.msra.mxu0 0.0
    %229 = vmatpush.xpose.msra.mxu0 0.0
    %230 = vmatpush.xpose.msra.mxu0 0.0
    %231 = vmatpush.xpose.msra.mxu0 0.0
    %232 = vmatpush.xpose.msra.mxu0 0.0
    %233 = vmatpush.xpose.msra.mxu0 0.0
    %234 = vmatpush.xpose.msra.mxu0 0.0
    %235 = vmatpush.xpose.msra.mxu0 0.0
    %236 = vmatpush.xpose.msra.mxu0 0.0
    %237 = vmatpush.xpose.msra.mxu0 %v221
    %238 = vmatpush.xpose.msra.mxu0 %v219
    %239 = vmatmul.f32.gmra.mxu0 %v215
    %v240 = vpop.f32.mrf.mxu0
    %v241 = vadd.f32 0.0, %v240
    %242 = vmatmul.f32.gmra.mxu0 %v217
    %v243 = vpop.f32.mrf.mxu0
    %v244 = vadd.f32 0.0, %v243
    %245 = vdwg.mxu0
    %v246 = vsel %vm80, %v241, -1e+30
    %v247 = vsel %vm81, %v244, -1e+30
    %v248 = vsel %vm121, %v246, -inf
    %249 = vmax.xlane.f32.xlu0 %v248
    %v250 = vpop.xlane.xlu0 %249
    %v251 = vsel %vm121, %v247, -inf
    %252 = vmax.xlane.f32.xlu0 %v251
    %v253 = vpop.xlane.xlu0 %252
    %v254 = vsub.f32 %v246, %v250
    %v255 = vsub.f32 %v247, %v253
    %v256 = vmul.f32 %v254, 1.442695
    %v257 = vpow.pop %v256
    %v258 = vmul.f32 %v255, 1.442695
    %v259 = vpow.pop %v258
    %v260 = vsel %vm121, %v257, 0.0
    %261 = vadd.xlane.f32.xlu0 %v260
    %v262 = vpop.xlane.xlu0 %261
    %v263 = vsel %vm121, %v259, 0.0
    %264 = vadd.xlane.f32.xlu0 %v263
    %v265 = vpop.xlane.xlu0 %264
    %v266 = vrcp.pop %v262
    %v267 = vmul.f32 %v262, %v266
    %v268 = vsub.f32 1.0, %v267
    %v269 = vmul.f32 %v266, %v268
    %v270 = vadd.f32 %v266, %v269
    %vm271 = vweird.f32 %v262
    %vm272 = vweird.f32 %v266
    %vm273 = vmor %vm271, %vm272
    %v274 = vsel %vm273, %v266, %v270
    %v275 = vand.u32 2147483647, %v262
    %vm276 = vcmp.eq.f32.partialorder %v275, 8.507059e+37
    %v277 = vand.u32 %v262, 2147483648
    %v278 = vor.u32 1.1754944e-38, %v277
    %v279 = vsel %vm276, %v278, %v274
    %v280 = vmul.f32 1.0, %v279
    %v281 = vrcp.pop %v265
    %v282 = vmul.f32 %v265, %v281
    %v283 = vsub.f32 1.0, %v282
    %v284 = vmul.f32 %v281, %v283
    %v285 = vadd.f32 %v281, %v284
    %vm286 = vweird.f32 %v265
    %vm287 = vweird.f32 %v281
    %vm288 = vmor %vm286, %vm287
    %v289 = vsel %vm288, %v281, %v285
    %v290 = vand.u32 2147483647, %v265
    %vm291 = vcmp.eq.f32.partialorder %v290, 8.507059e+37
    %v292 = vand.u32 %v265, 2147483648
    %v293 = vor.u32 1.1754944e-38, %v292
    %v294 = vsel %vm291, %v293, %v289
    %v295 = vmul.f32 1.0, %v294
    %v296 = vmul.f32 %v257, %v280
    %v297 = vmul.f32 %v259, %v295
    %298 = vrot.lane.b32.xlu0 %v53, 56
    %v299 = vpop.permute.xlu0 %298
    %300 = vrot.lane.b32.xlu0 %v56, 56
    %v301 = vpop.permute.xlu0 %300
    %v305 = vsel %vm121, %v296, 0
    %v308 = vsel %vm121, %v297, 0
    %310 = vmatpush.msra.mxu0 0.0
    %311 = vmatpush.msra.mxu0 0.0
    %312 = vmatpush.msra.mxu0 0.0
    %313 = vmatpush.msra.mxu0 0.0
    %314 = vmatpush.msra.mxu0 0.0
    %315 = vmatpush.msra.mxu0 0.0
    %316 = vmatpush.msra.mxu0 0.0
    %317 = vmatpush.msra.mxu0 0.0
    %318 = vmatpush.msra.mxu0 0.0
    %319 = vmatpush.msra.mxu0 0.0
    %320 = vmatpush.msra.mxu0 0.0
    %321 = vmatpush.msra.mxu0 0.0
    %322 = vmatpush.msra.mxu0 0.0
    %323 = vmatpush.msra.mxu0 0.0
    %324 = vmatpush.msra.mxu0 %v301
    %325 = vmatpush.msra.mxu0 %v299
    %326 = vmatmul.f32.gmra.mxu0 %v305
    %v327 = vpop.f32.mrf.mxu0
    %v328 = vadd.f32 0.0, %v327
    %329 = vmatmul.f32.gmra.mxu0 %v308
    %v330 = vpop.f32.mrf.mxu0
    %v331 = vadd.f32 0.0, %v330
    %332 = vdwg.mxu0
    %333 = vrot.lane.b32.xlu0 %v53, 112
    %v334 = vpop.permute.xlu0 %333
    %335 = vrot.lane.b32.xlu0 %v56, 112
    %v336 = vpop.permute.xlu0 %335
    %337 = vrot.lane.b32.xlu0 %v53, 80
    %v338 = vpop.permute.xlu0 %337
    %339 = vrot.lane.b32.xlu0 %v56, 80
    %v340 = vpop.permute.xlu0 %339
    %v341 = vsel %vm78, %v334, 0
    %v343 = vsel %vm78, %v336, 0
    %v345 = vsel %vm78, %v338, 0
    %v347 = vsel %vm78, %v340, 0
    %349 = vmatpush.xpose.msra.mxu0 0.0
    %350 = vmatpush.xpose.msra.mxu0 0.0
    %351 = vmatpush.xpose.msra.mxu0 0.0
    %352 = vmatpush.xpose.msra.mxu0 0.0
    %353 = vmatpush.xpose.msra.mxu0 0.0
    %354 = vmatpush.xpose.msra.mxu0 0.0
    %355 = vmatpush.xpose.msra.mxu0 0.0
    %356 = vmatpush.xpose.msra.mxu0 0.0
    %357 = vmatpush.xpose.msra.mxu0 0.0
    %358 = vmatpush.xpose.msra.mxu0 0.0
    %359 = vmatpush.xpose.msra.mxu0 0.0
    %360 = vmatpush.xpose.msra.mxu0 0.0
    %361 = vmatpush.xpose.msra.mxu0 0.0
    %362 = vmatpush.xpose.msra.mxu0 0.0
    %363 = vmatpush.xpose.msra.mxu0 %v347
    %364 = vmatpush.xpose.msra.mxu0 %v345
    %365 = vmatmul.f32.gmra.mxu0 %v341
    %v366 = vpop.f32.mrf.mxu0
    %v367 = vadd.f32 0.0, %v366
    %368 = vmatmul.f32.gmra.mxu0 %v343
    %v369 = vpop.f32.mrf.mxu0
    %v370 = vadd.f32 0.0, %v369
    %371 = vdwg.mxu0
    %v372 = vsel %vm80, %v367, -1e+30
    %v373 = vsel %vm81, %v370, -1e+30
    %v374 = vsel %vm121, %v372, -inf
    %375 = vmax.xlane.f32.xlu0 %v374
    %v376 = vpop.xlane.xlu0 %375
    %v377 = vsel %vm121, %v373, -inf
    %378 = vmax.xlane.f32.xlu0 %v377
    %v379 = vpop.xlane.xlu0 %378
    %v380 = vsub.f32 %v372, %v376
    %v381 = vsub.f32 %v373, %v379
    %v382 = vmul.f32 %v380, 1.442695
    %v383 = vpow.pop %v382
    %v384 = vmul.f32 %v381, 1.442695
    %v385 = vpow.pop %v384
    %v386 = vsel %vm121, %v383, 0.0
    %387 = vadd.xlane.f32.xlu0 %v386
    %v388 = vpop.xlane.xlu0 %387
    %v389 = vsel %vm121, %v385, 0.0
    %390 = vadd.xlane.f32.xlu0 %v389
    %v391 = vpop.xlane.xlu0 %390
    %v392 = vrcp.pop %v388
    %v393 = vmul.f32 %v388, %v392
    %v394 = vsub.f32 1.0, %v393
    %v395 = vmul.f32 %v392, %v394
    %v396 = vadd.f32 %v392, %v395
    %vm397 = vweird.f32 %v388
    %vm398 = vweird.f32 %v392
    %vm399 = vmor %vm397, %vm398
    %v400 = vsel %vm399, %v392, %v396
    %v401 = vand.u32 2147483647, %v388
    %vm402 = vcmp.eq.f32.partialorder %v401, 8.507059e+37
    %v403 = vand.u32 %v388, 2147483648
    %v404 = vor.u32 1.1754944e-38, %v403
    %v405 = vsel %vm402, %v404, %v400
    %v406 = vmul.f32 1.0, %v405
    %v407 = vrcp.pop %v391
    %v408 = vmul.f32 %v391, %v407
    %v409 = vsub.f32 1.0, %v408
    %v410 = vmul.f32 %v407, %v409
    %v411 = vadd.f32 %v407, %v410
    %vm412 = vweird.f32 %v391
    %vm413 = vweird.f32 %v407
    %vm414 = vmor %vm412, %vm413
    %v415 = vsel %vm414, %v407, %v411
    %v416 = vand.u32 2147483647, %v391
    %vm417 = vcmp.eq.f32.partialorder %v416, 8.507059e+37
    %v418 = vand.u32 %v391, 2147483648
    %v419 = vor.u32 1.1754944e-38, %v418
    %v420 = vsel %vm417, %v419, %v415
    %v421 = vmul.f32 1.0, %v420
    %v422 = vmul.f32 %v383, %v406
    %v423 = vmul.f32 %v385, %v421
    %424 = vrot.lane.b32.xlu0 %v53, 48
    %v425 = vpop.permute.xlu0 %424
    %426 = vrot.lane.b32.xlu0 %v56, 48
    %v427 = vpop.permute.xlu0 %426
    %v431 = vsel %vm121, %v422, 0
    %v434 = vsel %vm121, %v423, 0
    %436 = vmatpush.msra.mxu0 0.0
    %437 = vmatpush.msra.mxu0 0.0
    %438 = vmatpush.msra.mxu0 0.0
    %439 = vmatpush.msra.mxu0 0.0
    %440 = vmatpush.msra.mxu0 0.0
    %441 = vmatpush.msra.mxu0 0.0
    %442 = vmatpush.msra.mxu0 0.0
    %443 = vmatpush.msra.mxu0 0.0
    %444 = vmatpush.msra.mxu0 0.0
    %445 = vmatpush.msra.mxu0 0.0
    %446 = vmatpush.msra.mxu0 0.0
    %447 = vmatpush.msra.mxu0 0.0
    %448 = vmatpush.msra.mxu0 0.0
    %449 = vmatpush.msra.mxu0 0.0
    %450 = vmatpush.msra.mxu0 %v427
    %451 = vmatpush.msra.mxu0 %v425
    %452 = vmatmul.f32.gmra.mxu0 %v431
    %v453 = vpop.f32.mrf.mxu0
    %v454 = vadd.f32 0.0, %v453
    %455 = vmatmul.f32.gmra.mxu0 %v434
    %v456 = vpop.f32.mrf.mxu0
    %v457 = vadd.f32 0.0, %v456
    %458 = vdwg.mxu0
    %459 = vrot.lane.b32.xlu0 %v53, 104
    %v460 = vpop.permute.xlu0 %459
    %461 = vrot.lane.b32.xlu0 %v56, 104
    %v462 = vpop.permute.xlu0 %461
    %463 = vrot.lane.b32.xlu0 %v53, 72
    %v464 = vpop.permute.xlu0 %463
    %465 = vrot.lane.b32.xlu0 %v56, 72
    %v466 = vpop.permute.xlu0 %465
    %v467 = vsel %vm78, %v460, 0
    %v469 = vsel %vm78, %v462, 0
    %v471 = vsel %vm78, %v464, 0
    %v473 = vsel %vm78, %v466, 0
    %475 = vmatpush.xpose.msra.mxu0 0.0
    %476 = vmatpush.xpose.msra.mxu0 0.0
    %477 = vmatpush.xpose.msra.mxu0 0.0
    %478 = vmatpush.xpose.msra.mxu0 0.0
    %479 = vmatpush.xpose.msra.mxu0 0.0
    %480 = vmatpush.xpose.msra.mxu0 0.0
    %481 = vmatpush.xpose.msra.mxu0 0.0
    %482 = vmatpush.xpose.msra.mxu0 0.0
    %483 = vmatpush.xpose.msra.mxu0 0.0
    %484 = vmatpush.xpose.msra.mxu0 0.0
    %485 = vmatpush.xpose.msra.mxu0 0.0
    %486 = vmatpush.xpose.msra.mxu0 0.0
    %487 = vmatpush.xpose.msra.mxu0 0.0
    %488 = vmatpush.xpose.msra.mxu0 0.0
    %489 = vmatpush.xpose.msra.mxu0 %v473
    %490 = vmatpush.xpose.msra.mxu0 %v471
    %491 = vmatmul.f32.gmra.mxu0 %v467
    %v492 = vpop.f32.mrf.mxu0
    %v493 = vadd.f32 0.0, %v492
    %494 = vmatmul.f32.gmra.mxu0 %v469
    %v495 = vpop.f32.mrf.mxu0
    %v496 = vadd.f32 0.0, %v495
    %497 = vdwg.mxu0
    %v498 = vsel %vm80, %v493, -1e+30
    %v499 = vsel %vm81, %v496, -1e+30
    %v500 = vsel %vm121, %v498, -inf
    %501 = vmax.xlane.f32.xlu0 %v500
    %v502 = vpop.xlane.xlu0 %501
    %v503 = vsel %vm121, %v499, -inf
    %504 = vmax.xlane.f32.xlu0 %v503
    %v505 = vpop.xlane.xlu0 %504
    %v506 = vsub.f32 %v498, %v502
    %v507 = vsub.f32 %v499, %v505
    %v508 = vmul.f32 %v506, 1.442695
    %v509 = vpow.pop %v508
    %v510 = vmul.f32 %v507, 1.442695
    %v511 = vpow.pop %v510
    %v512 = vsel %vm121, %v509, 0.0
    %513 = vadd.xlane.f32.xlu0 %v512
    %v514 = vpop.xlane.xlu0 %513
    %v515 = vsel %vm121, %v511, 0.0
    %516 = vadd.xlane.f32.xlu0 %v515
    %v517 = vpop.xlane.xlu0 %516
    %v518 = vrcp.pop %v514
    %v519 = vmul.f32 %v514, %v518
    %v520 = vsub.f32 1.0, %v519
    %v521 = vmul.f32 %v518, %v520
    %v522 = vadd.f32 %v518, %v521
    %vm523 = vweird.f32 %v514
    %vm524 = vweird.f32 %v518
    %vm525 = vmor %vm523, %vm524
    %v526 = vsel %vm525, %v518, %v522
    %v527 = vand.u32 2147483647, %v514
    %vm528 = vcmp.eq.f32.partialorder %v527, 8.507059e+37
    %v529 = vand.u32 %v514, 2147483648
    %v530 = vor.u32 1.1754944e-38, %v529
    %v531 = vsel %vm528, %v530, %v526
    %v532 = vmul.f32 1.0, %v531
    %v533 = vrcp.pop %v517
    %v534 = vmul.f32 %v517, %v533
    %v535 = vsub.f32 1.0, %v534
    %v536 = vmul.f32 %v533, %v535
    %v537 = vadd.f32 %v533, %v536
    %vm538 = vweird.f32 %v517
    %vm539 = vweird.f32 %v533
    %vm540 = vmor %vm538, %vm539
    %v541 = vsel %vm540, %v533, %v537
    %v542 = vand.u32 2147483647, %v517
    %vm543 = vcmp.eq.f32.partialorder %v542, 8.507059e+37
    %v544 = vand.u32 %v517, 2147483648
    %v545 = vor.u32 1.1754944e-38, %v544
    %v546 = vsel %vm543, %v545, %v541
    %v547 = vmul.f32 1.0, %v546
    %v548 = vmul.f32 %v509, %v532
    %v549 = vmul.f32 %v511, %v547
    %550 = vrot.lane.b32.xlu0 %v53, 40
    %v551 = vpop.permute.xlu0 %550
    %552 = vrot.lane.b32.xlu0 %v56, 40
    %v553 = vpop.permute.xlu0 %552
    %v557 = vsel %vm121, %v548, 0
    %v560 = vsel %vm121, %v549, 0
    %562 = vmatpush.msra.mxu0 0.0
    %563 = vmatpush.msra.mxu0 0.0
    %564 = vmatpush.msra.mxu0 0.0
    %565 = vmatpush.msra.mxu0 0.0
    %566 = vmatpush.msra.mxu0 0.0
    %567 = vmatpush.msra.mxu0 0.0
    %568 = vmatpush.msra.mxu0 0.0
    %569 = vmatpush.msra.mxu0 0.0
    %570 = vmatpush.msra.mxu0 0.0
    %571 = vmatpush.msra.mxu0 0.0
    %572 = vmatpush.msra.mxu0 0.0
    %573 = vmatpush.msra.mxu0 0.0
    %574 = vmatpush.msra.mxu0 0.0
    %575 = vmatpush.msra.mxu0 0.0
    %576 = vmatpush.msra.mxu0 %v553
    %577 = vmatpush.msra.mxu0 %v551
    %578 = vmatmul.f32.gmra.mxu0 %v557
    %v579 = vpop.f32.mrf.mxu0
    %v580 = vadd.f32 0.0, %v579
    %581 = vmatmul.f32.gmra.mxu0 %v560
    %v582 = vpop.f32.mrf.mxu0
    %v583 = vadd.f32 0.0, %v582
    %584 = vdwg.mxu0
    %587 = vrot.lane.b32.xlu0 %v328, 8
    %v588 = vpop.permute.xlu0 %587
    %589 = vrot.lane.b32.xlu0 %v331, 8
    %v590 = vpop.permute.xlu0 %589
    %595 = vrot.lane.b32.xlu0 %v454, 16
    %v596 = vpop.permute.xlu0 %595
    %597 = vrot.lane.b32.xlu0 %v457, 16
    %v598 = vpop.permute.xlu0 %597
    %603 = vrot.lane.b32.xlu0 %v580, 24
    %v604 = vpop.permute.xlu0 %603
    %605 = vrot.lane.b32.xlu0 %v583, 24
    %v606 = vpop.permute.xlu0 %605
    %v609 = vsel %vm78, %v202, %v588
    %v610 = vsel %vm78, %v205, %v590
    %v611 = vsel %vm121, %v609, %v596
    %v612 = vsel %vm121, %v610, %v598
    %vm613 = vcmask 195584
    %v614 = vsel %vm613, %v611, %v604
    %v615 = vsel %vm613, %v612, %v606
    %v616 = vld [vmem:[%s1 + $0x10] sm:$0xff]
    %v617 = vld [vmem:[%s1 + $0x28] sm:$0xff]
    %v618 = vld [vmem:[%s1 + $0x40] sm:$0xff]
    %v619 = vld [vmem:[%s1 + $0x58] sm:$0xff]
    %v620 = vld [vmem:[%s3 + $0x2] sm:$0x1]
    %v622 = vperm.slane %v620, 0
    %v625 = vsel %vm28, %v614, 0
    %v628 = vsel %vm28, %v615, 0
    %630 = vmatpush.msra.mxu0 0.0
    %631 = vmatpush.msra.mxu0 0.0
    %632 = vmatpush.msra.mxu0 0.0
    %633 = vmatpush.msra.mxu0 0.0
    %634 = vmatpush.msra.mxu0 0.0
    %635 = vmatpush.msra.mxu0 0.0
    %636 = vmatpush.msra.mxu0 0.0
    %637 = vmatpush.msra.mxu0 0.0
    %638 = vmatpush.msra.mxu0 0.0
    %639 = vmatpush.msra.mxu0 0.0
    %640 = vmatpush.msra.mxu0 0.0
    %641 = vmatpush.msra.mxu0 0.0
    %642 = vmatpush.msra.mxu0 %v619
    %643 = vmatpush.msra.mxu0 %v618
    %644 = vmatpush.msra.mxu0 %v617
    %645 = vmatpush.msra.mxu0 %v616
    %646 = vmatmul.f32.gmra.mxu0 %v625
    %v647 = vpop.f32.mrf.mxu0
    %v648 = vadd.f32 %v622, %v647
    %649 = vmatmul.f32.gmra.mxu0 %v628
    %v650 = vpop.f32.mrf.mxu0
    %v651 = vadd.f32 %v622, %v650
    %652 = vdwg.mxu0
    %v653 = vld [vmem:[%s3 + $0x3] sm:$0x1]
    %v654 = vld [vmem:[%s3 + $0x4] sm:$0x1]
    %v655 = vadd.f32 %v648, %v18
    %v656 = vadd.f32 %v651, %v19
    %v657 = vsel %vm28, %v655, 0.0
    %658 = vadd.xlane.f32.xlu0 %v657
    %v659 = vpop.xlane.xlu0 %658
    %v660 = vsel %vm28, %v656, 0.0
    %661 = vadd.xlane.f32.xlu0 %v660
    %v662 = vpop.xlane.xlu0 %661
    %v663 = vrcp.pop 32.0
    %v664 = vmul.f32 32.0, %v663
    %v665 = vsub.f32 1.0, %v664
    %v666 = vmul.f32 %v663, %v665
    %v667 = vadd.f32 %v663, %v666
    %vm668 = vweird.f32 %v663
    %v669 = vsel %vm668, %v663, %v667
    %v670 = vmul.f32 %v659, %v669
    %v671 = vmul.f32 %v662, %v669
    %v672 = vsub.f32 %v655, %v670
    %v673 = vsub.f32 %v656, %v671
    %v674 = vmul.f32 %v672, %v672
    %v675 = vmul.f32 %v673, %v673
    %v676 = vsel %vm28, %v674, 0.0
    %677 = vadd.xlane.f32.xlu0 %v676
    %v678 = vpop.xlane.xlu0 %677
    %v679 = vsel %vm28, %v675, 0.0
    %680 = vadd.xlane.f32.xlu0 %v679
    %v681 = vpop.xlane.xlu0 %680
    %v682 = vmul.f32 %v678, %v669
    %v683 = vmul.f32 %v681, %v669
    %v684 = vadd.f32 %v682, 1e-05
    %v685 = vadd.f32 %v683, 1e-05
    %v686 = vrsqrt.pop %v684
    %v687 = vmul.f32 %v686, %v684
    %v688 = vmul.f32 %v687, %v686
    %v689 = vmul.f32 0.5, %v688
    %v690 = vsub.f32 1.5, %v689
    %v691 = vmul.f32 %v686, %v690
    %vm692 = vweird.f32 %v684
    %vm693 = vweird.f32 %v686
    %vm694 = vmor %vm692, %vm693
    %v695 = vsel %vm694, %v686, %v691
    %v696 = vrsqrt.pop %v685
    %v697 = vmul.f32 %v696, %v685
    %v698 = vmul.f32 %v697, %v696
    %v699 = vmul.f32 0.5, %v698
    %v700 = vsub.f32 1.5, %v699
    %v701 = vmul.f32 %v696, %v700
    %vm702 = vweird.f32 %v685
    %vm703 = vweird.f32 %v696
    %vm704 = vmor %vm702, %vm703
    %v705 = vsel %vm704, %v696, %v701
    %v706 = vmul.f32 %v672, %v695
    %v707 = vmul.f32 %v673, %v705
    %v709 = vperm.slane %v653, 0
    %v711 = vmul.f32 %v706, %v709
    %v712 = vmul.f32 %v707, %v709
    %v714 = vperm.slane %v654, 0
    %v716 = vadd.f32 %v711, %v714
    %v717 = vadd.f32 %v712, %v714
    %v718 = vld [vmem:[%s1] sm:$0xff]
    %v719 = vld [vmem:[%s1 + $0x18] sm:$0xff]
    %v720 = vld [vmem:[%s1 + $0x30] sm:$0xff]
    %v721 = vld [vmem:[%s1 + $0x48] sm:$0xff]
    %v722 = vld [vmem:[%s3] sm:$0x1]
    %v724 = vperm.slane %v722, 0
    %v727 = vsel %vm28, %v716, 0
    %v730 = vsel %vm28, %v717, 0
    %732 = vmatpush.msra.mxu0 0.0
    %733 = vmatpush.msra.mxu0 0.0
    %734 = vmatpush.msra.mxu0 0.0
    %735 = vmatpush.msra.mxu0 0.0
    %736 = vmatpush.msra.mxu0 0.0
    %737 = vmatpush.msra.mxu0 0.0
    %738 = vmatpush.msra.mxu0 0.0
    %739 = vmatpush.msra.mxu0 0.0
    %740 = vmatpush.msra.mxu0 0.0
    %741 = vmatpush.msra.mxu0 0.0
    %742 = vmatpush.msra.mxu0 0.0
    %743 = vmatpush.msra.mxu0 0.0
    %744 = vmatpush.msra.mxu0 %v721
    %745 = vmatpush.msra.mxu0 %v720
    %746 = vmatpush.msra.mxu0 %v719
    %747 = vmatpush.msra.mxu0 %v718
    %748 = vmatmul.f32.gmra.mxu0 %v727
    %v749 = vpop.f32.mrf.mxu0
    %v750 = vadd.f32 %v724, %v749
    %751 = vmatmul.f32.gmra.mxu0 %v730
    %v752 = vpop.f32.mrf.mxu0
    %v753 = vadd.f32 %v724, %v752
    %754 = vdwg.mxu0
    %v755 = vmul.f32 %v750, 0.5
    %v756 = vmul.f32 %v753, 0.5
    %v757 = vrcp.pop 1.4142135
    %v758 = vmul.f32 1.4142135, %v757
    %v759 = vsub.f32 1.0, %v758
    %v760 = vmul.f32 %v757, %v759
    %v761 = vadd.f32 %v757, %v760
    %vm762 = vweird.f32 %v757
    %v763 = vsel %vm762, %v757, %v761
    %v764 = vmul.f32 %v750, %v763
    %v765 = vmul.f32 %v753, %v763
    %v766 = vmul.f32 %v764, %v764
    %v767 = vmin.f32 16.0, %v766
    %v768 = vmul.f32 %v767, 2.1237322e-06
    %v769 = vadd.f32 %v768, 0.00028619796
    %v770 = vmul.f32 %v767, %v769
    %v771 = vadd.f32 %v770, 0.0036580483
    %v772 = vmul.f32 %v767, %v771
    %v773 = vadd.f32 %v772, 0.05243302
    %v774 = vmul.f32 %v767, %v773
    %v775 = vadd.f32 %v774, 0.18741608
    %v776 = vmul.f32 %v767, %v775
    %v777 = vadd.f32 %v776, 1.1283791
    %v778 = vmul.f32 %v764, %v777
    %v779 = vmul.f32 %v767, 3.8918573e-05
    %v780 = vadd.f32 %v779, 0.001143296
    %v781 = vmul.f32 %v767, %v780
    %v782 = vadd.f32 %v781, 0.014752088
    %v783 = vmul.f32 %v767, %v782
    %v784 = vadd.f32 %v783, 0.112945676
    %v785 = vmul.f32 %v767, %v784
    %v786 = vadd.f32 %v785, 0.4994258
    %v787 = vmul.f32 %v767, %v786
    %v788 = vadd.f32 %v787, 1.0
    %v789 = vrcp.pop %v788
    %v790 = vmul.f32 %v788, %v789
    %v791 = vsub.f32 1.0, %v790
    %v792 = vmul.f32 %v789, %v791
    %v793 = vadd.f32 %v789, %v792
    %vm794 = vweird.f32 %v788
    %vm795 = vweird.f32 %v789
    %vm796 = vmor %vm794, %vm795
    %v797 = vsel %vm796, %v789, %v793
    %v798 = vand.u32 2147483647, %v788
    %vm799 = vcmp.eq.f32.partialorder %v798, 8.507059e+37
    %v800 = vand.u32 %v788, 2147483648
    %v801 = vor.u32 1.1754944e-38, %v800
    %v802 = vsel %vm799, %v801, %v797
    %v803 = vmul.f32 %v778, %v802
    %v804 = vmin.f32 %v803, 1.0
    %v805 = vmax.f32 %v804, -1.0
    %v806 = vmul.f32 %v765, %v765
    %v807 = vmin.f32 16.0, %v806
    %v808 = vmul.f32 %v807, 2.1237322e-06
    %v809 = vadd.f32 %v808, 0.00028619796
    %v810 = vmul.f32 %v807, %v809
    %v811 = vadd.f32 %v810, 0.0036580483
    %v812 = vmul.f32 %v807, %v811
    %v813 = vadd.f32 %v812, 0.05243302
    %v814 = vmul.f32 %v807, %v813
    %v815 = vadd.f32 %v814, 0.18741608
    %v816 = vmul.f32 %v807, %v815
    %v817 = vadd.f32 %v816, 1.1283791
    %v818 = vmul.f32 %v765, %v817
    %v819 = vmul.f32 %v807, 3.8918573e-05
    %v820 = vadd.f32 %v819, 0.001143296
    %v821 = vmul.f32 %v807, %v820
    %v822 = vadd.f32 %v821, 0.014752088
    %v823 = vmul.f32 %v807, %v822
    %v824 = vadd.f32 %v823, 0.112945676
    %v825 = vmul.f32 %v807, %v824
    %v826 = vadd.f32 %v825, 0.4994258
    %v827 = vmul.f32 %v807, %v826
    %v828 = vadd.f32 %v827, 1.0
    %v829 = vrcp.pop %v828
    %v830 = vmul.f32 %v828, %v829
    %v831 = vsub.f32 1.0, %v830
    %v832 = vmul.f32 %v829, %v831
    %v833 = vadd.f32 %v829, %v832
    %vm834 = vweird.f32 %v828
    %vm835 = vweird.f32 %v829
    %vm836 = vmor %vm834, %vm835
    %v837 = vsel %vm836, %v829, %v833
    %v838 = vand.u32 2147483647, %v828
    %vm839 = vcmp.eq.f32.partialorder %v838, 8.507059e+37
    %v840 = vand.u32 %v828, 2147483648
    %v841 = vor.u32 1.1754944e-38, %v840
    %v842 = vsel %vm839, %v841, %v837
    %v843 = vmul.f32 %v818, %v842
    %v844 = vmin.f32 %v843, 1.0
    %v845 = vmax.f32 %v844, -1.0
    %v846 = vadd.f32 %v805, 1.0
    %v847 = vadd.f32 %v845, 1.0
    %v848 = vmul.f32 %v755, %v846
    %v849 = vmul.f32 %v756, %v847
    %v850 = vld [vmem:[%s3 + $0x7] sm:$0x1]
    %v851 = vld [vmem:[%s2] sm:$0xff]
    %v852 = vld [vmem:[%s2 + $0x8] sm:$0xff]
    %v853 = vld [vmem:[%s2 + $0x10] sm:$0xff]
    %v854 = vld [vmem:[%s2 + $0x18] sm:$0xff]
    %v855 = vld [vmem:[%s2 + $0x20] sm:$0xff]
    %v856 = vld [vmem:[%s2 + $0x28] sm:$0xff]
    %v857 = vld [vmem:[%s2 + $0x30] sm:$0xff]
    %v858 = vld [vmem:[%s2 + $0x38] sm:$0xff]
    %v859 = vld [vmem:[%s2 + $0x40] sm:$0xff]
    %v860 = vld [vmem:[%s2 + $0x48] sm:$0xff]
    %v861 = vld [vmem:[%s2 + $0x50] sm:$0xff]
    %v862 = vld [vmem:[%s2 + $0x58] sm:$0xff]
    %v863 = vld [vmem:[%s2 + $0x60] sm:$0xff]
    %v864 = vld [vmem:[%s2 + $0x68] sm:$0xff]
    %v865 = vld [vmem:[%s2 + $0x70] sm:$0xff]
    %v866 = vld [vmem:[%s2 + $0x78] sm:$0xff]
    %v868 = vperm.slane %v850, 0
    %870 = vmatpush.msra.mxu0 %v866
    %871 = vmatpush.msra.mxu0 %v865
    %872 = vmatpush.msra.mxu0 %v864
    %873 = vmatpush.msra.mxu0 %v863
    %874 = vmatpush.msra.mxu0 %v862
    %875 = vmatpush.msra.mxu0 %v861
    %876 = vmatpush.msra.mxu0 %v860
    %877 = vmatpush.msra.mxu0 %v859
    %878 = vmatpush.msra.mxu0 %v858
    %879 = vmatpush.msra.mxu0 %v857
    %880 = vmatpush.msra.mxu0 %v856
    %881 = vmatpush.msra.mxu0 %v855
    %882 = vmatpush.msra.mxu0 %v854
    %883 = vmatpush.msra.mxu0 %v853
    %884 = vmatpush.msra.mxu0 %v852
    %885 = vmatpush.msra.mxu0 %v851
    %886 = vmatmul.f32.gmra.mxu0 %v848
    %v887 = vpop.f32.mrf.mxu0
    %v888 = vadd.f32 %v868, %v887
    %889 = vmatmul.f32.gmra.mxu0 %v849
    %v890 = vpop.f32.mrf.mxu0
    %v891 = vadd.f32 %v868, %v890
    %892 = vdwg.mxu0
    %v893 = vld [vmem:[%s3 + $0x5] sm:$0x1]
    %v894 = vld [vmem:[%s3 + $0x6] sm:$0x1]
    %v895 = vadd.f32 %v888, %v716
    %v896 = vadd.f32 %v891, %v717
    %v897 = vsel %vm28, %v895, 0.0
    %898 = vadd.xlane.f32.xlu0 %v897
    %v899 = vpop.xlane.xlu0 %898
    %v900 = vsel %vm28, %v896, 0.0
    %901 = vadd.xlane.f32.xlu0 %v900
    %v902 = vpop.xlane.xlu0 %901
    %v903 = vmul.f32 %v899, %v669
    %v904 = vmul.f32 %v902, %v669
    %v905 = vsub.f32 %v895, %v903
    %v906 = vsub.f32 %v896, %v904
    %v907 = vmul.f32 %v905, %v905
    %v908 = vmul.f32 %v906, %v906
    %v909 = vsel %vm28, %v907, 0.0
    %910 = vadd.xlane.f32.xlu0 %v909
    %v911 = vpop.xlane.xlu0 %910
    %v912 = vsel %vm28, %v908, 0.0
    %913 = vadd.xlane.f32.xlu0 %v912
    %v914 = vpop.xlane.xlu0 %913
    %v915 = vmul.f32 %v911, %v669
    %v916 = vmul.f32 %v914, %v669
    %v917 = vadd.f32 %v915, 1e-05
    %v918 = vadd.f32 %v916, 1e-05
    %v919 = vrsqrt.pop %v917
    %v920 = vmul.f32 %v919, %v917
    %v921 = vmul.f32 %v920, %v919
    %v922 = vmul.f32 0.5, %v921
    %v923 = vsub.f32 1.5, %v922
    %v924 = vmul.f32 %v919, %v923
    %vm925 = vweird.f32 %v917
    %vm926 = vweird.f32 %v919
    %vm927 = vmor %vm925, %vm926
    %v928 = vsel %vm927, %v919, %v924
    %v929 = vrsqrt.pop %v918
    %v930 = vmul.f32 %v929, %v918
    %v931 = vmul.f32 %v930, %v929
    %v932 = vmul.f32 0.5, %v931
    %v933 = vsub.f32 1.5, %v932
    %v934 = vmul.f32 %v929, %v933
    %vm935 = vweird.f32 %v918
    %vm936 = vweird.f32 %v929
    %vm937 = vmor %vm935, %vm936
    %v938 = vsel %vm937, %v929, %v934
    %v939 = vmul.f32 %v905, %v928
    %v940 = vmul.f32 %v906, %v938
    %v942 = vperm.slane %v893, 0
    %v944 = vmul.f32 %v939, %v942
    %v945 = vmul.f32 %v940, %v942
    %v947 = vperm.slane %v894, 0
    %v949 = vadd.f32 %v944, %v947
    %v950 = vadd.f32 %v945, %v947
    %951 = vst.msk [vmem:[#allocation2] sm:$0xff] %vm28, %v949
    %952 = vst.msk [vmem:[#allocation2 + $0x8] sm:$0xff] %vm28, %v950
    // Predicated region
    $region18: #{tpu_custom_call.1} parent=1 // pred_check
      _
    $region19: #{tpu_custom_call.1} parent=1 // pred_check_branch
      %954 = sbr.rel (0) target = $region21
    $region20: #{tpu_custom_call.1} parent=1 // pred_region
      %956 = vsyncadd [#allocation3], 0
      %s957 = sshll.u32 [#allocation2], 4
      %s958 = int_to_ptr.vmem [resolvable:$true] %s957
      %s959 = sshll.u32 %s4, 4
      %s960 = int_to_ptr.hbm [resolvable:$true] %s959
      %965 = dma.vmem_to_hbm [thread:$0]  %s958, 256, %s960, [#allocation3], 128, 128, 8
    $region21: #{tpu_custom_call.1} parent=1 // pred_fallthru
      _
    // Predicated region
    $region22: #{tpu_custom_call.1} parent=1 // pred_check
      _
    $region23: #{tpu_custom_call.1} parent=1 // pred_check_branch
      %967 = sbr.rel (0) target = $region25
    $region24: #{tpu_custom_call.1} parent=1 // pred_region
      %969 = dma.done [#allocation3], 256
    $region25: #{tpu_custom_call.1} parent=1 // pred_fallthru
      _
    %970 = vsyncpa [#allocation3], 1

</llo_original>
